<compile_context>
chip_gen: v6e
topology: v6e:2x2x1
jax: 0.10.0
libtpu: 0.0.40
codegen_flags: <defaults>
</compile_context>

<pallas_src>
import functools

import jax
import jax.numpy as jnp
from jax.experimental import pallas as pl
from jax.experimental.pallas import tpu as pltpu


def _round_up(x, m):
    return ((x + m - 1) // m) * m


def _collision_loss_kernel(planes_ref, onehot_ref, a_ref, c_ref, valid_ref, decay_ref,
                           out_ref):
    """One time chunk: planes [C, B_pad, tT] -> partial sums [B_pad, 128]."""
    C, B_pad, tT = planes_ref.shape

    oh = onehot_ref[...]          # [C, B_pad, 1] f32 one-hot of targets (0 on batch pad)
    a = a_ref[...]                # [B_pad, 1]  w[y_b]/B          (0 on batch pad)
    c = c_ref[...]                # [B_pad, 1]  w[y_b]*y_b/B      (0 on batch pad)
    valid = valid_ref[...]        # [1, tT]     1.0 for real steps, 0.0 for time pad
    decay = decay_ref[...]        # [1, tT]     exp(-max(0,time-1-t)/12), 0.0 for time pad

    if C == 2:
        # Binary case: lse - logit_y == softplus(logit_other - logit_y). One exp + one log.
        x0 = planes_ref[0].astype(jnp.float32)        # [B_pad, tT]
        x1 = planes_ref[1].astype(jnp.float32)        # [B_pad, tT]
        sgn = oh[0] - oh[1]                           # +1 if y==0, -1 if y==1, 0 on pad
        d = sgn * (x1 - x0)                           # logit_other - logit_target
        ce = jnp.maximum(d, 0.0) + jnp.log(1.0 + jnp.exp(-jnp.abs(d)))
    else:
        # General C: reductions over the leading class axis are plane-wise (pure VPU).
        x = planes_ref[...].astype(jnp.float32)       # [C, B_pad, tT]
        m = jnp.max(x, axis=0)                        # [B_pad, tT]
        lse = m + jnp.log(jnp.sum(jnp.exp(x - m), axis=0))
        ce = lse - jnp.sum(x * oh, axis=0)

    # temp_loss + exp_loss, divided by B and masked for padding, all folded into one coef:
    #   contrib[b,t] = ce[b,t] * (a[b]*valid[t] + c[b]*decay[t])
    coef = a * valid + c * decay                      # [B_pad, tT]
    contrib = ce * coef

    # Fold the lane axis into a single 128-wide group with static, lane-aligned slices
    # (whole-vreg adds, no XLU). The cross-lane/sublane reduce happens in the wrapper.
    part = contrib[:, 0:128]
    for j in range(1, tT // 128):
        part = part + contrib[:, j * 128:(j + 1) * 128]
    out_ref[...] = part                               # [B_pad, 128]


def _choose_time_chunk(T, C, B_pad, itemsize, budget_bytes, max_chunk):
    """Pick the time-chunk length (multiple of 128) from a per-grid-step VMEM budget."""
    # Per time step: double-buffered logits block + ~8 f32 elementwise temporaries
    # + double-buffered (1,tT) valid/decay blocks padded to 8 sublanes.
    per_t = 2 * C * B_pad * itemsize + 8 * B_pad * 4 + 2 * 2 * 8 * 4
    tT = min(max_chunk, budget_bytes // per_t, _round_up(T, 128))
    tT = max(128, (tT // 128) * 128)
    return int(tT)


def collision_loss_forward(outputs, targets, weights, time, *,
                           vmem_budget_bytes=None, max_time_chunk=8192):
    """outputs: [T, B, C] float (f32 or bf16), targets: [B] int, weights: [C] float,
    time: python number. Returns the scalar loss."""
    outputs = jnp.asarray(outputs)
    if outputs.dtype != jnp.bfloat16:
        outputs = outputs.astype(jnp.float32)
    T, B, C = outputs.shape
    targets = jnp.asarray(targets, jnp.int32)
    weights = jnp.asarray(weights, jnp.float32)

    B_pad = _round_up(B, 8)
    itemsize = jnp.dtype(outputs.dtype).itemsize

    if vmem_budget_bytes is None:
        # Generation-aware budget (v7x has 64 MiB VMEM vs 128 MiB on v5e/v6e), capped so the
        # whole pipeline stays within every generation's default scoped-VMEM limit.
        try:
            vmem_budget_bytes = min(int(pltpu.get_tpu_info().vmem_capacity_bytes) // 8,
                                    10 << 20)
        except Exception:
            vmem_budget_bytes = 8 << 20

    tT = _choose_time_chunk(T, C, B_pad, itemsize, vmem_budget_bytes, max_time_chunk)
    num_chunks = int(pl.cdiv(T, tT))
    T_pad = num_chunks * tT

    # Lane-dense layout: class planes, batch on sublanes, time on lanes (layout plumbing).
    planes = jnp.transpose(outputs, (2, 1, 0))                       # [C, B, T]
    planes = jnp.pad(planes, ((0, 0), (0, B_pad - B), (0, T_pad - T)))

    # Per-batch constants, hoisted out of the kernel (padded batch rows contribute 0).
    w_y = weights[targets]                                            # [B]
    tgt_f = targets.astype(jnp.float32)                               # [B]
    a = jnp.pad(w_y / B, (0, B_pad - B)).reshape(B_pad, 1)
    c = jnp.pad(w_y * tgt_f / B, (0, B_pad - B)).reshape(B_pad, 1)
    onehot = (jnp.arange(C, dtype=jnp.int32)[:, None] == targets[None, :]).astype(jnp.float32)
    onehot = jnp.pad(onehot, ((0, 0), (0, B_pad - B))).reshape(C, B_pad, 1)

    # Per-time vectors: validity mask + precomputed exponential decay (0 on time padding).
    steps = jnp.arange(T_pad, dtype=jnp.float32)
    in_range = steps < T
    valid = in_range.astype(jnp.float32).reshape(1, T_pad)
    decay = jnp.where(
        in_range,
        jnp.exp(-jnp.maximum(0.0, float(time) - 1.0 - steps) / 12.0),
        0.0,
    ).reshape(1, T_pad)

    partials = pl.pallas_call(
        _collision_loss_kernel,
        out_shape=jax.ShapeDtypeStruct((B_pad, num_chunks * 128), jnp.float32),
        grid=(num_chunks,),
        in_specs=[
            pl.BlockSpec((C, B_pad, tT), lambda t: (0, 0, t)),   # logits class planes
            pl.BlockSpec((C, B_pad, 1), lambda t: (0, 0, 0)),    # one-hot targets, resident
            pl.BlockSpec((B_pad, 1), lambda t: (0, 0)),          # w[y]/B, resident
            pl.BlockSpec((B_pad, 1), lambda t: (0, 0)),          # w[y]*y/B, resident
            pl.BlockSpec((1, tT), lambda t: (0, t)),             # validity mask
            pl.BlockSpec((1, tT), lambda t: (0, t)),             # precomputed decay
        ],
        out_specs=pl.BlockSpec((B_pad, 128), lambda t: (0, t)),  # per-chunk lane-dense partial
        compiler_params=pltpu.CompilerParams(dimension_semantics=("parallel",)),
    )(planes, onehot, a, c, valid, decay)

    # Tiny final reduction of the per-chunk partials.
    return jnp.sum(partials)


def collision_loss_ref(outputs, targets, weights, time):
    """Pure-JAX reference mirroring the PyTorch module."""
    T = outputs.shape[0]
    logp = jax.nn.log_softmax(outputs.astype(jnp.float32), axis=-1)               # [T, B, C]
    picked = jnp.take_along_axis(
        logp, targets[None, :, None].astype(jnp.int32), axis=-1
    )[..., 0]                                                                      # [T, B]
    w_t = weights[targets]                                                         # [B]
    temp = -w_t[None, :] * picked                                                  # [T, B]
    i = jnp.arange(T)
    decay = jnp.exp(-jnp.maximum(0, time - i - 1) / 12.0)                          # [T]
    exp_loss = decay[:, None] * temp * targets.astype(jnp.float32)[None, :]
    return jnp.sum(jnp.mean(temp + exp_loss, axis=1))


if __name__ == "__main__":
    key = jax.random.PRNGKey(0)

    # Case 1: binary collision classes (module's intended use), single chunk.
    T, B, C = 16, 8, 2
    time = T
    k1, k2 = jax.random.split(key)
    outputs = jax.random.normal(k1, (T, B, C), dtype=jnp.float32)
    targets = jax.random.bernoulli(k2, 0.5, (B,)).astype(jnp.int32)
    weights = jnp.array([1.0, 5.0], dtype=jnp.float32)

    loss = collision_loss_forward(outputs, targets, weights, time)
    jax.block_until_ready(loss)
    ref = collision_loss_ref(outputs, targets, weights, time)
    assert jnp.allclose(loss, ref, rtol=1e-5, atol=1e-5), (loss, ref)

    # Case 2: general class count + batch not a multiple of 8 (padded-batch path).
    T2, B2, C2 = 10, 6, 4
    k3, k4 = jax.random.split(k1)
    out2 = jax.random.normal(k3, (T2, B2, C2), dtype=jnp.float32)
    tgt2 = jax.random.randint(k4, (B2,), 0, C2).astype(jnp.int32)
    w2 = jnp.array([1.0, 2.0, 3.0, 4.0], dtype=jnp.float32)
    loss2 = collision_loss_forward(out2, tgt2, w2, T2)
    jax.block_until_ready(loss2)
    ref2 = collision_loss_ref(out2, tgt2, w2, T2)
    assert jnp.allclose(loss2, ref2, rtol=1e-5, atol=1e-5), (loss2, ref2)

    # Case 3: chunked path (3 parallel time chunks) with bf16 logits and time padding.
    T3, B3, C3 = 300, 8, 2
    k5, k6 = jax.random.split(k3)
    out3 = jax.random.normal(k5, (T3, B3, C3), dtype=jnp.float32).astype(jnp.bfloat16)
    tgt3 = jax.random.bernoulli(k6, 0.5, (B3,)).astype(jnp.int32)
    loss3 = collision_loss_forward(out3, tgt3, weights, T3, max_time_chunk=128)
    jax.block_until_ready(loss3)
    ref3 = collision_loss_ref(out3.astype(jnp.float32), tgt3, weights, T3)
    assert jnp.allclose(loss3, ref3, rtol=1e-4, atol=1e-4), (loss3, ref3)

    print("KERNEL_OK")
</pallas_src>

<mosaic_0001>
module attributes {stable_mosaic.version = 11 : i64} {
  func.func @_collision_loss_kernel(%arg0: i32, %arg1: memref<2x8x128xf32, #tpu.memory_space<vmem>>, %arg2: memref<2x8x1xf32, #tpu.memory_space<vmem>>, %arg3: memref<8x1xf32, #tpu.memory_space<vmem>>, %arg4: memref<8x1xf32, #tpu.memory_space<vmem>>, %arg5: memref<1x128xf32, #tpu.memory_space<vmem>>, %arg6: memref<1x128xf32, #tpu.memory_space<vmem>>, %arg7: memref<8x128xf32, #tpu.memory_space<vmem>>) attributes {dimension_semantics = [#tpu.dimension_semantics<parallel>], iteration_bounds = array<i64: 1>, scalar_prefetch = 0 : i64, scratch_operands = 0 : i64, tpu.core_type = #tpu.core_type<tc>, window_params = [{transform_indices = @transform_0, window_bounds = array<i64: 2, 8, 128>}, {pipeline_mode = #tpu.pipeline_mode<synchronous>, transform_indices = @transform_1, window_bounds = array<i64: 2, 8, 1>}, {pipeline_mode = #tpu.pipeline_mode<synchronous>, transform_indices = @transform_2, window_bounds = array<i64: 8, 1>}, {pipeline_mode = #tpu.pipeline_mode<synchronous>, transform_indices = @transform_3, window_bounds = array<i64: 8, 1>}, {transform_indices = @transform_4, window_bounds = array<i64: 1, 128>}, {transform_indices = @transform_5, window_bounds = array<i64: 1, 128>}, {transform_indices = @transform_6, window_bounds = array<i64: 8, 128>}]} {
    %c0 = arith.constant 0 : index
    %c0_0 = arith.constant 0 : index
    %c0_1 = arith.constant 0 : index
    %0 = vector.load %arg2[%c0, %c0_0, %c0_1] : memref<2x8x1xf32, #tpu.memory_space<vmem>>, vector<2x8x1xf32>
    %c0_2 = arith.constant 0 : index
    %c0_3 = arith.constant 0 : index
    %1 = vector.load %arg3[%c0_2, %c0_3] : memref<8x1xf32, #tpu.memory_space<vmem>>, vector<8x1xf32>
    %c0_4 = arith.constant 0 : index
    %c0_5 = arith.constant 0 : index
    %2 = vector.load %arg4[%c0_4, %c0_5] : memref<8x1xf32, #tpu.memory_space<vmem>>, vector<8x1xf32>
    %c0_6 = arith.constant 0 : index
    %c0_7 = arith.constant 0 : index
    %3 = vector.load %arg5[%c0_6, %c0_7] : memref<1x128xf32, #tpu.memory_space<vmem>>, vector<1x128xf32>
    %c0_8 = arith.constant 0 : index
    %c0_9 = arith.constant 0 : index
    %4 = vector.load %arg6[%c0_8, %c0_9] : memref<1x128xf32, #tpu.memory_space<vmem>>, vector<1x128xf32>
    %c0_10 = arith.constant 0 : index
    %c0_11 = arith.constant 0 : index
    %c0_12 = arith.constant 0 : index
    %5 = vector.load %arg1[%c0_10, %c0_11, %c0_12] : memref<2x8x128xf32, #tpu.memory_space<vmem>>, vector<1x8x128xf32>
    %6 = vector.shape_cast %5 : vector<1x8x128xf32> to vector<8x128xf32>
    %c1 = arith.constant 1 : index
    %c0_13 = arith.constant 0 : index
    %c0_14 = arith.constant 0 : index
    %7 = vector.load %arg1[%c1, %c0_13, %c0_14] : memref<2x8x128xf32, #tpu.memory_space<vmem>>, vector<1x8x128xf32>
    %8 = vector.shape_cast %7 : vector<1x8x128xf32> to vector<8x128xf32>
    %9 = vector.extract_strided_slice %0 {offsets = [0, 0, 0], sizes = [1, 8, 1], strides = [1, 1, 1]} : vector<2x8x1xf32> to vector<1x8x1xf32>
    %10 = vector.shape_cast %9 : vector<1x8x1xf32> to vector<8x1xf32>
    %11 = vector.extract_strided_slice %0 {offsets = [1, 0, 0], sizes = [1, 8, 1], strides = [1, 1, 1]} : vector<2x8x1xf32> to vector<1x8x1xf32>
    %12 = vector.shape_cast %11 : vector<1x8x1xf32> to vector<8x1xf32>
    %13 = arith.subf %10, %12 : vector<8x1xf32>
    %14 = arith.subf %8, %6 : vector<8x128xf32>
    %15 = vector.broadcast %13 : vector<8x1xf32> to vector<8x128xf32>
    %16 = arith.mulf %15, %14 : vector<8x128xf32>
    %cst = arith.constant 0.000000e+00 : f32
    %17 = vector.broadcast %cst : f32 to vector<8x128xf32>
    %18 = arith.maximumf %16, %17 : vector<8x128xf32>
    %19 = math.absf %16 : vector<8x128xf32>
    %cst_15 = arith.constant 0.000000e+00 : f32
    %20 = vector.broadcast %cst_15 : f32 to vector<8x128xf32>
    %21 = arith.subf %20, %19 : vector<8x128xf32>
    %22 = math.exp %21 : vector<8x128xf32>
    %cst_16 = arith.constant 1.000000e+00 : f32
    %23 = vector.broadcast %cst_16 : f32 to vector<8x128xf32>
    %24 = arith.addf %23, %22 : vector<8x128xf32>
    %25 = math.log %24 : vector<8x128xf32>
    %26 = arith.addf %18, %25 : vector<8x128xf32>
    %27 = vector.broadcast %1 : vector<8x1xf32> to vector<8x128xf32>
    %28 = vector.broadcast %3 : vector<1x128xf32> to vector<8x128xf32>
    %29 = arith.mulf %27, %28 : vector<8x128xf32>
    %30 = vector.broadcast %2 : vector<8x1xf32> to vector<8x128xf32>
    %31 = vector.broadcast %4 : vector<1x128xf32> to vector<8x128xf32>
    %32 = arith.mulf %30, %31 : vector<8x128xf32>
    %33 = arith.addf %29, %32 : vector<8x128xf32>
    %34 = arith.mulf %26, %33 : vector<8x128xf32>
    %c0_17 = arith.constant 0 : index
    %c0_18 = arith.constant 0 : index
    %35 = vector.load %arg7[%c0_17, %c0_18] : memref<8x128xf32, #tpu.memory_space<vmem>>, vector<8x128xf32>
    tpu.vector_store %arg7[%c0_17, %c0_18], %34 {strides = array<i32>} : memref<8x128xf32, #tpu.memory_space<vmem>>, vector<8x128xf32>,
    return
  }
  func.func @transform_0(%arg0: i32) -> (i32, i32, i32) {
    %c0_i32 = arith.constant 0 : i32
    %c0_i32_0 = arith.constant 0 : i32
    %c0_i32_1 = arith.constant 0 : i32
    return %c0_i32, %c0_i32_0, %arg0 : i32, i32, i32
  }
  func.func @transform_1(%arg0: i32) -> (i32, i32, i32) {
    %c0_i32 = arith.constant 0 : i32
    %c0_i32_0 = arith.constant 0 : i32
    %c0_i32_1 = arith.constant 0 : i32
    %c0_i32_2 = arith.constant 0 : i32
    return %c0_i32, %c0_i32_0, %c0_i32_1 : i32, i32, i32
  }
  func.func @transform_2(%arg0: i32) -> (i32, i32) {
    %c0_i32 = arith.constant 0 : i32
    %c0_i32_0 = arith.constant 0 : i32
    %c0_i32_1 = arith.constant 0 : i32
    return %c0_i32, %c0_i32_0 : i32, i32
  }
  func.func @transform_3(%arg0: i32) -> (i32, i32) {
    %c0_i32 = arith.constant 0 : i32
    %c0_i32_0 = arith.constant 0 : i32
    %c0_i32_1 = arith.constant 0 : i32
    return %c0_i32, %c0_i32_0 : i32, i32
  }
  func.func @transform_4(%arg0: i32) -> (i32, i32) {
    %c0_i32 = arith.constant 0 : i32
    %c0_i32_0 = arith.constant 0 : i32
    return %c0_i32, %arg0 : i32, i32
  }
  func.func @transform_5(%arg0: i32) -> (i32, i32) {
    %c0_i32 = arith.constant 0 : i32
    %c0_i32_0 = arith.constant 0 : i32
    return %c0_i32, %arg0 : i32, i32
  }
  func.func @transform_6(%arg0: i32) -> (i32, i32) {
    %c0_i32 = arith.constant 0 : i32
    %c0_i32_0 = arith.constant 0 : i32
    return %c0_i32, %arg0 : i32, i32
  }
}

</mosaic_0001>

<llo_original>
// kernel: tpu_custom_call.1
$region0: #{tpu_custom_call.1}
  #allocation0 [shape = 'u32[]', space=smem, size = 0x4, offset = 0x4, fixed_abs, tag = 'smem constant byte address 0x4 - core index']
  #allocation1 [shape = 'u32[144,128]{1,0:T(1,128)}', space=vmem, size = 0x12000, scoped, tag = 'internal scratch']
  %s0 = inlined_call_operand.vmem [shape: f32[2,8,128], index: 0, kind: input, shape index: {}]
  %s1 = inlined_call_operand.vmem [shape: f32[2,8,1], index: 1, kind: input, shape index: {}]
  %s2 = inlined_call_operand.vmem [shape: f32[8,1], index: 2, kind: input, shape index: {}]
  %s3 = inlined_call_operand.vmem [shape: f32[8,1], index: 3, kind: input, shape index: {}]
  %s4 = inlined_call_operand.vmem [shape: f32[1,128], index: 4, kind: input, shape index: {}]
  %s5 = inlined_call_operand.vmem [shape: f32[1,128], index: 5, kind: input, shape index: {}]
  %s6 = inlined_call_operand.hbm [shape: f32[8,128], index: 6, kind: output, shape index: {}]
  %s7 = sld [smem:[#allocation0]]
  $region34: #{tpu_custom_call.1} parent=0
    _
  %s9 = ssub.s32 1, %s7
  %s10 = scalar_select 0, %s9, %s7
  $region1: #{tpu_custom_call.1} parent=0
    #allocation2 [shape = 'u8[4096]{0}', space=vmem, size = 0x1000, scoped, tag = 'output window, operand 0, single buffered']
    #allocation3 [shape = 's32[1]{0}', space=sflag, size = 0x4, scoped, tag = 'scoped memory for tpu_custom_call.1']
    %11 = vsyncpa [#allocation3], 0
    // Predicated region
    $region2: #{tpu_custom_call.1} parent=1 // pred_check
      _
    $region3: #{tpu_custom_call.1} parent=1 // pred_check_branch
      %13 = sbr.rel (0) target = $region5
    $region4: #{tpu_custom_call.1} parent=1 // pred_region
      _
    $region5: #{tpu_custom_call.1} parent=1 // pred_fallthru
      _
    // Predicated region
    $region6: #{tpu_custom_call.1} parent=1 // pred_check
      _
    $region7: #{tpu_custom_call.1} parent=1 // pred_check_branch
      %15 = sbr.rel (0) target = $region9
    $region8: #{tpu_custom_call.1} parent=1 // pred_region
      _
    $region9: #{tpu_custom_call.1} parent=1 // pred_fallthru
      _
    // Predicated region
    $region10: #{tpu_custom_call.1} parent=1 // pred_check
      _
    $region11: #{tpu_custom_call.1} parent=1 // pred_check_branch
      %17 = sbr.rel (0) target = $region13
    $region12: #{tpu_custom_call.1} parent=1 // pred_region
      _
    $region13: #{tpu_custom_call.1} parent=1 // pred_fallthru
      _
    // Predicated region
    $region14: #{tpu_custom_call.1} parent=1 // pred_check
      _
    $region15: #{tpu_custom_call.1} parent=1 // pred_check_branch
      %19 = sbr.rel (0) target = $region17
    $region16: #{tpu_custom_call.1} parent=1 // pred_region
      _
    $region17: #{tpu_custom_call.1} parent=1 // pred_fallthru
      _
    // Predicated region
    $region18: #{tpu_custom_call.1} parent=1 // pred_check
      _
    $region19: #{tpu_custom_call.1} parent=1 // pred_check_branch
      %21 = sbr.rel (0) target = $region21
    $region20: #{tpu_custom_call.1} parent=1 // pred_region
      _
    $region21: #{tpu_custom_call.1} parent=1 // pred_fallthru
      _
    // Predicated region
    $region22: #{tpu_custom_call.1} parent=1 // pred_check
      _
    $region23: #{tpu_custom_call.1} parent=1 // pred_check_branch
      %23 = sbr.rel (0) target = $region25
    $region24: #{tpu_custom_call.1} parent=1 // pred_region
      _
    $region25: #{tpu_custom_call.1} parent=1 // pred_fallthru
      _
    %v24 = vld [vmem:[%s1] sm:$0xff]
    %v25 = vld [vmem:[%s1 + $0x8] sm:$0xff]
    %v26 = vld [vmem:[%s2] sm:$0xff]
    %v27 = vld [vmem:[%s3] sm:$0xff]
    %v28 = vld [vmem:[%s4] sm:$0x1]
    %v29 = vld [vmem:[%s5] sm:$0x1]
    %v30 = vld [vmem:[%s0] sm:$0xff]
    %s31 = scalar_lea.vmem %s0, 8
    %v32 = vld [vmem:[%s31] sm:$0xff]
    %v33 = vsub.f32 %v24, %v25
    %v34 = vsub.f32 %v32, %v30
    %36 = vset.pattern.permute.xlu0 0
    %37 = vperm.xlu0 %36, %v33
    %v38 = vpop.permute.xlu0 %37
    %v40 = vmul.f32 %v38, %v34
    %v41 = vmax.f32 %v40, 0.0
    %v42 = vand.u32 2147483647, %v40
    %v43 = vsub.f32 0.0, %v42
    %v44 = vmul.f32 %v43, 1.442695
    %v45 = vpow.pop %v44
    %v46 = vadd.f32 %v45, 1.0
    %v47 = vlog2.pop %v46
    %v48 = vmul.f32 %v47, 0.6931472
    %v49 = vadd.f32 %v41, %v48
    %51 = vset.pattern.permute.xlu0 0
    %52 = vperm.xlu0 %51, %v26
    %v53 = vpop.permute.xlu0 %52
    %v56 = vlaneseq
    %v57 = vshrl.u32 %v56, 7
    %v58 = vsub.s32 0, %v57
    %v59 = vrot.slane %v28, %v58
    %v61 = vmul.f32 %v53, %v59
    %63 = vset.pattern.permute.xlu0 0
    %64 = vperm.xlu0 %63, %v27
    %v65 = vpop.permute.xlu0 %64
    %v68 = vlaneseq
    %v69 = vshrl.u32 %v68, 7
    %v70 = vsub.s32 0, %v69
    %v71 = vrot.slane %v29, %v70
    %v73 = vmul.f32 %v65, %v71
    %v74 = vadd.f32 %v61, %v73
    %v75 = vmul.f32 %v49, %v74
    %76 = vst [vmem:[#allocation2] sm:$0xff] %v75
    // Predicated region
    $region26: #{tpu_custom_call.1} parent=1 // pred_check
      _
    $region27: #{tpu_custom_call.1} parent=1 // pred_check_branch
      %78 = sbr.rel (0) target = $region29
    $region28: #{tpu_custom_call.1} parent=1 // pred_region
      %s80 = ssub.s32 128, 128
      %81 = vsyncadd [#allocation3], %s80
      %s83 = sshll.u32 [#allocation2], 4
      %s84 = int_to_ptr.vmem [resolvable:$true] %s83
      %86 = dma.vmem_to_hbm [thread:$0]  %s84, 128, %s6, [#allocation3]
    $region29: #{tpu_custom_call.1} parent=1 // pred_fallthru
      _
    // Predicated region
    $region30: #{tpu_custom_call.1} parent=1 // pred_check
      _
    $region31: #{tpu_custom_call.1} parent=1 // pred_check_branch
      %88 = sbr.rel (0) target = $region33
    $region32: #{tpu_custom_call.1} parent=1 // pred_region
      %89 = dma.done [#allocation3], 128
    $region33: #{tpu_custom_call.1} parent=1 // pred_fallthru
      _
    %90 = vsyncpa [#allocation3], 1

</llo_original>
